<compile_context>
chip_gen: v5e
topology: v5e:2x2
jax: 0.10.0
libtpu: 0.0.40
codegen_flags: <defaults>
</compile_context>

<pallas_src>
import math

import jax
import jax.numpy as jnp
from jax.experimental import pallas as pl
from jax.experimental.pallas import tpu as pltpu

FEAT = 12288  # Linear in_features, fixed by nn.Linear(12288, 1)


def _disc_head_kernel(x_ref, w_ref, b_ref, out_ref):
    """Single-pass head for one B-tile.

    x_ref:   (TB, 12288) activations (bf16 or f32; promoted on the VPU)
    w_ref:   (1, 12288)  Linear weight row (resident; tiny)
    b_ref:   (1, 1)      bias scalar in SMEM
    out_ref: (TB, 2)     f32; column 0 = logits, column 1 = sigmoid(logits)
    """
    w = w_ref[...].astype(jnp.float32)          # one tiny upcast of the weight row
    prod = x_ref[...] * w                       # bf16*f32 -> f32 promote on the VPU
    logits = jnp.sum(prod, axis=-1, keepdims=True) + b_ref[0, 0]   # XLU reduce, f32
    out_ref[:, 0:1] = logits
    out_ref[:, 1:2] = jax.nn.sigmoid(logits)    # EUP transcendental, hides under DMA


def _pick_tb(B, itemsize):
    """Dtype-aware batch tile.

    ~6.3 MiB per input buffer (12.6 MiB double-buffered): 256 rows bf16,
    128 rows f32 — fits v5e's 16 MiB scoped-VMEM default and v7x's 64 MiB
    physical VMEM.  When B >= 16 we force >= 2 grid steps so the 'parallel'
    batch axis can engage both v7x TensorCores.
    """
    cap = 256 if itemsize <= 2 else 128
    if B <= cap:
        tb = B
        if B >= 16:
            half = -(-B // 2)
            tb = min(tb, ((half + 7) // 8) * 8)   # sublane-aligned half-batch
    else:
        tb = cap
    return tb


def discriminator_head(x_feat, weight, bias):
    """Discriminator head: flatten -> Linear(12288, 1) -> Sigmoid.

    x_feat: (B, 12288) pre-flattened backbone features (preferred; keep them
            bf16 — the kernel upcasts on the VPU).  A (B, C, H, W) tensor with
            C*H*W == 12288 is also accepted, but note that the reshape may
            force a full HBM relayout in front of an already HBM-bound
            kernel; the backbone should emit the contiguous 2-D slab.
    weight: (1, 12288)  (PyTorch nn.Linear weight layout, out x in)
    bias:   (1,) or (1, 1)
    Returns (logits (B, 1), prediction (B, 1)) as float32.
    """
    if x_feat.ndim > 2:
        # Matches torch.reshape(x, (x.shape[0], -1)) on a contiguous NCHW
        # tensor.  Prefer feeding 2-D directly (see docstring).
        x_feat = x_feat.reshape(x_feat.shape[0], -1)
    B, F = x_feat.shape
    assert F == FEAT, (B, F)

    bias2d = jnp.asarray(bias, dtype=jnp.float32).reshape(1, 1)

    x_itemsize = jnp.dtype(x_feat.dtype).itemsize
    w_itemsize = jnp.dtype(weight.dtype).itemsize
    tb = _pick_tb(B, x_itemsize)
    grid = (pl.cdiv(B, tb),)

    # Pin the scoped-VMEM budget explicitly (double-buffered input + weight
    # + packed output, plus slack).  Stays under v5e's 16 MiB default path
    # and far under v7x's 64 MiB physical ceiling.
    vmem_need = 2 * (tb * FEAT * x_itemsize) + 2 * (FEAT * w_itemsize) + 2 * (tb * 2 * 4)
    vmem_limit = max(vmem_need + (4 << 20), 16 << 20)

    packed = pl.pallas_call(
        _disc_head_kernel,
        out_shape=jax.ShapeDtypeStruct((B, 2), jnp.float32),
        grid_spec=pltpu.PrefetchScalarGridSpec(
            num_scalar_prefetch=0,
            grid=grid,
            in_specs=[
                pl.BlockSpec((tb, FEAT), lambda i: (i, 0)),          # activations
                pl.BlockSpec((1, FEAT), lambda i: (0, 0)),           # weight row
                pl.BlockSpec(memory_space=pltpu.MemorySpace.SMEM),   # bias scalar
            ],
            out_specs=pl.BlockSpec((tb, 2), lambda i: (i, 0)),       # [logits|pred]
        ),
        compiler_params=pltpu.CompilerParams(
            dimension_semantics=("parallel",),   # batch axis: shard across TCs
            vmem_limit_bytes=int(vmem_limit),
        ),
    )(x_feat, weight, bias2d)

    logits = packed[:, 0:1]
    pred = packed[:, 1:2]
    return logits, pred


def init_linear_params(key):
    """Matches Discriminator.__init_weight for nn.Linear:
    xavier_uniform_(weight, gain=1.0), zeros_(bias)."""
    fan_in, fan_out = FEAT, 1
    bound = math.sqrt(6.0 / (fan_in + fan_out))
    weight = jax.random.uniform(
        key, (1, FEAT), minval=-bound, maxval=bound, dtype=jnp.float32
    )
    bias = jnp.zeros((1,), dtype=jnp.float32)
    return weight, bias


if __name__ == "__main__":
    key = jax.random.PRNGKey(0)
    kx, kw, kx2 = jax.random.split(key, 3)

    weight, bias = init_linear_params(kw)

    # --- Case 1: small batch, bf16 activations (recommended data path). ---
    # Backbone output: 2048 channels at a 2x3 spatial grid (2048*2*3 == 12288),
    # already flattened to the 2-D slab the head consumes.
    B = 2
    x2d = jax.random.normal(kx, (B, FEAT), dtype=jnp.float32).astype(jnp.bfloat16)

    logits, pred = discriminator_head(x2d, weight, bias)
    jax.block_until_ready((logits, pred))

    xf = x2d.astype(jnp.float32)
    ref_logits = xf @ weight.T + bias
    ref_pred = jax.nn.sigmoid(ref_logits)
    assert logits.shape == (B, 1) and pred.shape == (B, 1)
    assert jnp.allclose(logits, ref_logits, atol=2e-3, rtol=2e-3)
    assert jnp.allclose(pred, ref_pred, atol=1e-4, rtol=1e-4)

    # --- Case 2: medium batch exercising the multi-step tiled grid path
    # (>=2 grid steps for dual-TC, partial last tile). ---
    B2 = 20
    x2d_big = jax.random.normal(kx2, (B2, FEAT), dtype=jnp.float32).astype(jnp.bfloat16)
    logits2, pred2 = discriminator_head(x2d_big, weight, bias)
    jax.block_until_ready((logits2, pred2))

    xf2 = x2d_big.astype(jnp.float32)
    ref_logits2 = xf2 @ weight.T + bias
    ref_pred2 = jax.nn.sigmoid(ref_logits2)
    assert logits2.shape == (B2, 1) and pred2.shape == (B2, 1)
    assert jnp.allclose(logits2, ref_logits2, atol=2e-3, rtol=2e-3)
    assert jnp.allclose(pred2, ref_pred2, atol=1e-4, rtol=1e-4)

    print("KERNEL_OK")
</pallas_src>

<mosaic_0001>
module attributes {stable_mosaic.version = 11 : i64} {
  func.func @_disc_head_kernel(%arg0: i32, %arg1: memref<2x12288xbf16, #tpu.memory_space<vmem>>, %arg2: memref<1x12288xf32, #tpu.memory_space<vmem>>, %arg3: memref<1x1xf32, #tpu.memory_space<smem>>, %arg4: memref<2x2xf32, #tpu.memory_space<vmem>>) attributes {dimension_semantics = [#tpu.dimension_semantics<parallel>], iteration_bounds = array<i64: 1>, scalar_prefetch = 0 : i64, scratch_operands = 0 : i64, tpu.core_type = #tpu.core_type<tc>, window_params = [{transform_indices = @transform_0, window_bounds = array<i64: 2, 12288>}, {pipeline_mode = #tpu.pipeline_mode<synchronous>, transform_indices = @transform_1, window_bounds = array<i64: 1, 12288>}, {transform_indices = @transform_2, window_bounds = array<i64: 1, 1>}, {transform_indices = @transform_3, window_bounds = array<i64: 2, 2>}]} {
    %c0 = arith.constant 0 : index
    %c0_0 = arith.constant 0 : index
    %0 = vector.load %arg2[%c0, %c0_0] : memref<1x12288xf32, #tpu.memory_space<vmem>>, vector<1x12288xf32>
    %c0_1 = arith.constant 0 : index
    %c0_2 = arith.constant 0 : index
    %1 = vector.load %arg1[%c0_1, %c0_2] : memref<2x12288xbf16, #tpu.memory_space<vmem>>, vector<2x12288xbf16>
    %2 = arith.extf %1 : vector<2x12288xbf16> to vector<2x12288xf32>
    %3 = vector.broadcast %0 : vector<1x12288xf32> to vector<2x12288xf32>
    %4 = arith.mulf %2, %3 : vector<2x12288xf32>
    %cst = arith.constant dense<0.000000e+00> : vector<2xf32>
    %5 = vector.multi_reduction <add>, %4, %cst [1] : vector<2x12288xf32> to vector<2xf32>
    %6 = vector.shape_cast %5 : vector<2xf32> to vector<2x1xf32>
    %c0_3 = arith.constant 0 : index
    %c0_4 = arith.constant 0 : index
    %7 = memref.load %arg3[%c0_3, %c0_4] : memref<1x1xf32, #tpu.memory_space<smem>>
    %8 = vector.broadcast %7 : f32 to vector<2x1xf32>
    %9 = arith.addf %6, %8 : vector<2x1xf32>
    %c0_5 = arith.constant 0 : index
    %c0_6 = arith.constant 0 : index
    %10 = vector.load %arg4[%c0_5, %c0_6] : memref<2x2xf32, #tpu.memory_space<vmem>>, vector<2x1xf32>
    tpu.vector_store %arg4[%c0_5, %c0_6], %9 {strides = array<i32>} : memref<2x2xf32, #tpu.memory_space<vmem>>, vector<2x1xf32>,
    %11 = arith.negf %9 : vector<2x1xf32>
    %12 = math.exp %11 : vector<2x1xf32>
    %cst_7 = arith.constant 1.000000e+00 : f32
    %13 = vector.broadcast %cst_7 : f32 to vector<2x1xf32>
    %14 = arith.addf %13, %12 : vector<2x1xf32>
    %15 = arith.divf %13, %14 : vector<2x1xf32>
    %c0_8 = arith.constant 0 : index
    %c1 = arith.constant 1 : index
    %16 = vector.load %arg4[%c0_8, %c1] : memref<2x2xf32, #tpu.memory_space<vmem>>, vector<2x1xf32>
    tpu.vector_store %arg4[%c0_8, %c1], %15 {strides = array<i32>} : memref<2x2xf32, #tpu.memory_space<vmem>>, vector<2x1xf32>,
    return
  }
  func.func @transform_0(%arg0: i32) -> (i32, i32) {
    %c0_i32 = arith.constant 0 : i32
    %c0_i32_0 = arith.constant 0 : i32
    return %arg0, %c0_i32 : i32, i32
  }
  func.func @transform_1(%arg0: i32) -> (i32, i32) {
    %c0_i32 = arith.constant 0 : i32
    %c0_i32_0 = arith.constant 0 : i32
    %c0_i32_1 = arith.constant 0 : i32
    return %c0_i32, %c0_i32_0 : i32, i32
  }
  func.func @transform_2(%arg0: i32) -> (i32, i32) {
    %c0_i32 = arith.constant 0 : i32
    %c0_i32_0 = arith.constant 0 : i32
    %c0_i32_1 = arith.constant 0 : i32
    return %c0_i32, %c0_i32_0 : i32, i32
  }
  func.func @transform_3(%arg0: i32) -> (i32, i32) {
    %c0_i32 = arith.constant 0 : i32
    %c0_i32_0 = arith.constant 0 : i32
    return %arg0, %c0_i32 : i32, i32
  }
}

</mosaic_0001>

<llo_original>
// kernel: tpu_custom_call.1
$region0: #{tpu_custom_call.1}
  #allocation0 [shape = 'u32[]', space=smem, size = 0x4, offset = 0x4, fixed_abs, tag = 'smem constant byte address 0x4 - core index']
  #allocation1 [shape = 'u32[72,128]{1,0:T(1,128)}', space=vmem, size = 0x9000, scoped, tag = 'internal scratch']
  #allocation2 [shape = 'f32[1,1]{1,0:T(1,128)S(6)}', space=smem, size = 0x200, scoped, tag = 'scoped memory for tpu_custom_call.1']
  %s0 = inlined_call_operand.hbm [shape: bf16[2,12288], index: 0, kind: input, shape index: {}]
  %s1 = inlined_call_operand.hbm [shape: f32[1,12288], index: 1, kind: input, shape index: {}]
  %s2 = inlined_call_operand.<no memory space> [shape: f32[1,1], index: 2, kind: input, shape index: {}]
  %s3 = inlined_call_operand.hbm [shape: f32[2,2], index: 3, kind: output, shape index: {}]
  %s4 = sld [smem:[#allocation0]]
  $region30: #{tpu_custom_call.1} parent=0
    _
  %s6 = ssub.s32 1, %s4
  %s7 = scalar_select 0, %s6, %s4
  %8 = sst [smem:[#allocation2]] %s2
  $region1: #{tpu_custom_call.1} parent=0
    #allocation3 [shape = 'u8[49152]{0}', space=vmem, size = 0xc000, scoped, tag = 'input window, operand 0, single buffered']
    #allocation4 [shape = 's32[1]{0}', space=sflag, size = 0x4, scoped, tag = 'scoped memory for tpu_custom_call.1']
    #allocation5 [shape = 's32[1]{0}', space=sflag, size = 0x4, scoped, tag = 'scoped memory for tpu_custom_call.1']
    #allocation6 [shape = 'u8[49152]{0}', space=vmem, size = 0xc000, scoped, tag = 'input window, operand 1, single buffered']
    #allocation7 [shape = 's32[1]{0}', space=sflag, size = 0x4, scoped, tag = 'scoped memory for tpu_custom_call.1']
    #allocation8 [shape = 'u8[1024]{0}', space=vmem, size = 0x400, scoped, tag = 'output window, operand 0, single buffered']
    %9 = vsyncpa [#allocation4], 0
    %10 = vsyncpa [#allocation7], 0
    %11 = vsyncpa [#allocation5], 0
    // Predicated region
    $region2: #{tpu_custom_call.1} parent=1 // pred_check
      _
    $region3: #{tpu_custom_call.1} parent=1 // pred_check_branch
      %13 = sbr.rel (0) target = $region5
    $region4: #{tpu_custom_call.1} parent=1 // pred_region
      %15 = vsyncadd [#allocation4], 0
      %s17 = sshll.u32 %s0, 4
      %s18 = int_to_ptr.hbm [resolvable:$true] %s17
      %s19 = sshll.u32 [#allocation3], 4
      %s20 = int_to_ptr.vmem [resolvable:$true] %s19
      %22 = dma.hbm_to_vmem [thread:$0]  %s18, 1536, %s20, [#allocation4]
    $region5: #{tpu_custom_call.1} parent=1 // pred_fallthru
      _
    // Predicated region
    $region6: #{tpu_custom_call.1} parent=1 // pred_check
      _
    $region7: #{tpu_custom_call.1} parent=1 // pred_check_branch
      %24 = sbr.rel (0) target = $region9
    $region8: #{tpu_custom_call.1} parent=1 // pred_region
      %26 = vsyncadd [#allocation7], 0
      %s28 = sshll.u32 %s1, 4
      %s29 = int_to_ptr.hbm [resolvable:$true] %s28
      %s30 = sshll.u32 [#allocation6], 4
      %s31 = int_to_ptr.vmem [resolvable:$true] %s30
      %33 = dma.hbm_to_vmem [thread:$0]  %s29, 1536, %s31, [#allocation7]
    $region9: #{tpu_custom_call.1} parent=1 // pred_fallthru
      _
    // Predicated region
    $region10: #{tpu_custom_call.1} parent=1 // pred_check
      _
    $region11: #{tpu_custom_call.1} parent=1 // pred_check_branch
      %35 = sbr.rel (0) target = $region13
    $region12: #{tpu_custom_call.1} parent=1 // pred_region
      _
    $region13: #{tpu_custom_call.1} parent=1 // pred_fallthru
      _
    // Predicated region
    $region14: #{tpu_custom_call.1} parent=1 // pred_check
      _
    $region15: #{tpu_custom_call.1} parent=1 // pred_check_branch
      %37 = sbr.rel (0) target = $region17
    $region16: #{tpu_custom_call.1} parent=1 // pred_region
      %39 = dma.done [#allocation4], 1536
    $region17: #{tpu_custom_call.1} parent=1 // pred_fallthru
      _
    // Predicated region
    $region18: #{tpu_custom_call.1} parent=1 // pred_check
      _
    $region19: #{tpu_custom_call.1} parent=1 // pred_check_branch
      %41 = sbr.rel (0) target = $region21
    $region20: #{tpu_custom_call.1} parent=1 // pred_region
      %43 = dma.done [#allocation7], 1536
    $region21: #{tpu_custom_call.1} parent=1 // pred_fallthru
      _
    %v44 = vld [vmem:[#allocation6] sm:$0xff]
    %v45 = vld [vmem:[#allocation6 + $0x8] sm:$0xff]
    %v46 = vld [vmem:[#allocation6 + $0x10] sm:$0xff]
    %v47 = vld [vmem:[#allocation6 + $0x18] sm:$0xff]
    %v48 = vld [vmem:[#allocation6 + $0x20] sm:$0xff]
    %v49 = vld [vmem:[#allocation6 + $0x28] sm:$0xff]
    %v50 = vld [vmem:[#allocation6 + $0x30] sm:$0xff]
    %v51 = vld [vmem:[#allocation6 + $0x38] sm:$0xff]
    %v52 = vld [vmem:[#allocation6 + $0x40] sm:$0xff]
    %v53 = vld [vmem:[#allocation6 + $0x48] sm:$0xff]
    %v54 = vld [vmem:[#allocation6 + $0x50] sm:$0xff]
    %v55 = vld [vmem:[#allocation6 + $0x58] sm:$0xff]
    %v56 = vld [vmem:[#allocation3] sm:$0xff]
    %v57 = vld [vmem:[#allocation3 + $0x8] sm:$0xff]
    %v58 = vld [vmem:[#allocation3 + $0x10] sm:$0xff]
    %v59 = vld [vmem:[#allocation3 + $0x18] sm:$0xff]
    %v60 = vld [vmem:[#allocation3 + $0x20] sm:$0xff]
    %v61 = vld [vmem:[#allocation3 + $0x28] sm:$0xff]
    %v62 = vld [vmem:[#allocation3 + $0x30] sm:$0xff]
    %v63 = vld [vmem:[#allocation3 + $0x38] sm:$0xff]
    %v64 = vld [vmem:[#allocation3 + $0x40] sm:$0xff]
    %v65 = vld [vmem:[#allocation3 + $0x48] sm:$0xff]
    %v66 = vld [vmem:[#allocation3 + $0x50] sm:$0xff]
    %v67 = vld [vmem:[#allocation3 + $0x58] sm:$0xff]
    %v68 = vunpack.c.l.bf16 %v56
    %v69 = vunpack.c.h.bf16 %v56
    %v70 = vunpack.c.l.bf16 %v57
    %v71 = vunpack.c.h.bf16 %v57
    %v72 = vunpack.c.l.bf16 %v58
    %v73 = vunpack.c.h.bf16 %v58
    %v74 = vunpack.c.l.bf16 %v59
    %v75 = vunpack.c.h.bf16 %v59
    %v76 = vunpack.c.l.bf16 %v60
    %v77 = vunpack.c.h.bf16 %v60
    %v78 = vunpack.c.l.bf16 %v61
    %v79 = vunpack.c.h.bf16 %v61
    %v80 = vunpack.c.l.bf16 %v62
    %v81 = vunpack.c.h.bf16 %v62
    %v82 = vunpack.c.l.bf16 %v63
    %v83 = vunpack.c.h.bf16 %v63
    %v84 = vunpack.c.l.bf16 %v64
    %v85 = vunpack.c.h.bf16 %v64
    %v86 = vunpack.c.l.bf16 %v65
    %v87 = vunpack.c.h.bf16 %v65
    %v88 = vunpack.c.l.bf16 %v66
    %v89 = vunpack.c.h.bf16 %v66
    %v90 = vunpack.c.l.bf16 %v67
    %v91 = vunpack.c.h.bf16 %v67
    %v104 = vperm.slane %v44, 0
    %v105 = vperm.slane %v44, 1
    %v106 = vperm.slane %v44, 2
    %v107 = vperm.slane %v44, 3
    %v108 = vperm.slane %v44, 4
    %v109 = vperm.slane %v44, 5
    %v110 = vperm.slane %v44, 6
    %v111 = vperm.slane %v44, 7
    %v112 = vperm.slane %v45, 0
    %v113 = vperm.slane %v45, 1
    %v114 = vperm.slane %v45, 2
    %v115 = vperm.slane %v45, 3
    %v116 = vperm.slane %v45, 4
    %v117 = vperm.slane %v45, 5
    %v118 = vperm.slane %v45, 6
    %v119 = vperm.slane %v45, 7
    %v120 = vperm.slane %v46, 0
    %v121 = vperm.slane %v46, 1
    %v122 = vperm.slane %v46, 2
    %v123 = vperm.slane %v46, 3
    %v124 = vperm.slane %v46, 4
    %v125 = vperm.slane %v46, 5
    %v126 = vperm.slane %v46, 6
    %v127 = vperm.slane %v46, 7
    %v128 = vperm.slane %v47, 0
    %v129 = vperm.slane %v47, 1
    %v130 = vperm.slane %v47, 2
    %v131 = vperm.slane %v47, 3
    %v132 = vperm.slane %v47, 4
    %v133 = vperm.slane %v47, 5
    %v134 = vperm.slane %v47, 6
    %v135 = vperm.slane %v47, 7
    %v136 = vperm.slane %v48, 0
    %v137 = vperm.slane %v48, 1
    %v138 = vperm.slane %v48, 2
    %v139 = vperm.slane %v48, 3
    %v140 = vperm.slane %v48, 4
    %v141 = vperm.slane %v48, 5
    %v142 = vperm.slane %v48, 6
    %v143 = vperm.slane %v48, 7
    %v144 = vperm.slane %v49, 0
    %v145 = vperm.slane %v49, 1
    %v146 = vperm.slane %v49, 2
    %v147 = vperm.slane %v49, 3
    %v148 = vperm.slane %v49, 4
    %v149 = vperm.slane %v49, 5
    %v150 = vperm.slane %v49, 6
    %v151 = vperm.slane %v49, 7
    %v152 = vperm.slane %v50, 0
    %v153 = vperm.slane %v50, 1
    %v154 = vperm.slane %v50, 2
    %v155 = vperm.slane %v50, 3
    %v156 = vperm.slane %v50, 4
    %v157 = vperm.slane %v50, 5
    %v158 = vperm.slane %v50, 6
    %v159 = vperm.slane %v50, 7
    %v160 = vperm.slane %v51, 0
    %v161 = vperm.slane %v51, 1
    %v162 = vperm.slane %v51, 2
    %v163 = vperm.slane %v51, 3
    %v164 = vperm.slane %v51, 4
    %v165 = vperm.slane %v51, 5
    %v166 = vperm.slane %v51, 6
    %v167 = vperm.slane %v51, 7
    %v168 = vperm.slane %v52, 0
    %v169 = vperm.slane %v52, 1
    %v170 = vperm.slane %v52, 2
    %v171 = vperm.slane %v52, 3
    %v172 = vperm.slane %v52, 4
    %v173 = vperm.slane %v52, 5
    %v174 = vperm.slane %v52, 6
    %v175 = vperm.slane %v52, 7
    %v176 = vperm.slane %v53, 0
    %v177 = vperm.slane %v53, 1
    %v178 = vperm.slane %v53, 2
    %v179 = vperm.slane %v53, 3
    %v180 = vperm.slane %v53, 4
    %v181 = vperm.slane %v53, 5
    %v182 = vperm.slane %v53, 6
    %v183 = vperm.slane %v53, 7
    %v184 = vperm.slane %v54, 0
    %v185 = vperm.slane %v54, 1
    %v186 = vperm.slane %v54, 2
    %v187 = vperm.slane %v54, 3
    %v188 = vperm.slane %v54, 4
    %v189 = vperm.slane %v54, 5
    %v190 = vperm.slane %v54, 6
    %v191 = vperm.slane %v54, 7
    %v192 = vperm.slane %v55, 0
    %v193 = vperm.slane %v55, 1
    %v194 = vperm.slane %v55, 2
    %v195 = vperm.slane %v55, 3
    %v196 = vperm.slane %v55, 4
    %v197 = vperm.slane %v55, 5
    %v198 = vperm.slane %v55, 6
    %v199 = vperm.slane %v55, 7
    %v200 = vrot.slane %v105, 6
    %v201 = vrot.slane %v106, 4
    %v202 = vrot.slane %v107, 2
    %v203 = vrot.slane %v109, 6
    %v204 = vrot.slane %v110, 4
    %v205 = vrot.slane %v111, 2
    %v206 = vrot.slane %v113, 6
    %v207 = vrot.slane %v114, 4
    %v208 = vrot.slane %v115, 2
    %v209 = vrot.slane %v117, 6
    %v210 = vrot.slane %v118, 4
    %v211 = vrot.slane %v119, 2
    %v212 = vrot.slane %v121, 6
    %v213 = vrot.slane %v122, 4
    %v214 = vrot.slane %v123, 2
    %v215 = vrot.slane %v125, 6
    %v216 = vrot.slane %v126, 4
    %v217 = vrot.slane %v127, 2
    %v218 = vrot.slane %v129, 6
    %v219 = vrot.slane %v130, 4
    %v220 = vrot.slane %v131, 2
    %v221 = vrot.slane %v133, 6
    %v222 = vrot.slane %v134, 4
    %v223 = vrot.slane %v135, 2
    %v224 = vrot.slane %v137, 6
    %v225 = vrot.slane %v138, 4
    %v226 = vrot.slane %v139, 2
    %v227 = vrot.slane %v141, 6
    %v228 = vrot.slane %v142, 4
    %v229 = vrot.slane %v143, 2
    %v230 = vrot.slane %v145, 6
    %v231 = vrot.slane %v146, 4
    %v232 = vrot.slane %v147, 2
    %v233 = vrot.slane %v149, 6
    %v234 = vrot.slane %v150, 4
    %v235 = vrot.slane %v151, 2
    %v236 = vrot.slane %v153, 6
    %v237 = vrot.slane %v154, 4
    %v238 = vrot.slane %v155, 2
    %v239 = vrot.slane %v157, 6
    %v240 = vrot.slane %v158, 4
    %v241 = vrot.slane %v159, 2
    %v242 = vrot.slane %v161, 6
    %v243 = vrot.slane %v162, 4
    %v244 = vrot.slane %v163, 2
    %v245 = vrot.slane %v165, 6
    %v246 = vrot.slane %v166, 4
    %v247 = vrot.slane %v167, 2
    %v248 = vrot.slane %v169, 6
    %v249 = vrot.slane %v170, 4
    %v250 = vrot.slane %v171, 2
    %v251 = vrot.slane %v173, 6
    %v252 = vrot.slane %v174, 4
    %v253 = vrot.slane %v175, 2
    %v254 = vrot.slane %v177, 6
    %v255 = vrot.slane %v178, 4
    %v256 = vrot.slane %v179, 2
    %v257 = vrot.slane %v181, 6
    %v258 = vrot.slane %v182, 4
    %v259 = vrot.slane %v183, 2
    %v260 = vrot.slane %v185, 6
    %v261 = vrot.slane %v186, 4
    %v262 = vrot.slane %v187, 2
    %v263 = vrot.slane %v189, 6
    %v264 = vrot.slane %v190, 4
    %v265 = vrot.slane %v191, 2
    %v266 = vrot.slane %v193, 6
    %v267 = vrot.slane %v194, 4
    %v268 = vrot.slane %v195, 2
    %v269 = vrot.slane %v197, 6
    %v270 = vrot.slane %v198, 4
    %v271 = vrot.slane %v199, 2
    %vm272 = vcmask 1041408
    %v273 = vsel %vm272, %v104, %v200
    %vm274 = vcmask 1045508
    %v275 = vsel %vm274, %v201, %v202
    %vm276 = vcmask 1043456
    %v277 = vsel %vm276, %v273, %v275
    %v278 = vsel %vm272, %v108, %v203
    %v279 = vsel %vm274, %v204, %v205
    %v280 = vsel %vm276, %v278, %v279
    %v281 = vsel %vm272, %v112, %v206
    %v282 = vsel %vm274, %v207, %v208
    %v283 = vsel %vm276, %v281, %v282
    %v284 = vsel %vm272, %v116, %v209
    %v285 = vsel %vm274, %v210, %v211
    %v286 = vsel %vm276, %v284, %v285
    %v287 = vsel %vm272, %v120, %v212
    %v288 = vsel %vm274, %v213, %v214
    %v289 = vsel %vm276, %v287, %v288
    %v290 = vsel %vm272, %v124, %v215
    %v291 = vsel %vm274, %v216, %v217
    %v292 = vsel %vm276, %v290, %v291
    %v293 = vsel %vm272, %v128, %v218
    %v294 = vsel %vm274, %v219, %v220
    %v295 = vsel %vm276, %v293, %v294
    %v296 = vsel %vm272, %v132, %v221
    %v297 = vsel %vm274, %v222, %v223
    %v298 = vsel %vm276, %v296, %v297
    %v299 = vsel %vm272, %v136, %v224
    %v300 = vsel %vm274, %v225, %v226
    %v301 = vsel %vm276, %v299, %v300
    %v302 = vsel %vm272, %v140, %v227
    %v303 = vsel %vm274, %v228, %v229
    %v304 = vsel %vm276, %v302, %v303
    %v305 = vsel %vm272, %v144, %v230
    %v306 = vsel %vm274, %v231, %v232
    %v307 = vsel %vm276, %v305, %v306
    %v308 = vsel %vm272, %v148, %v233
    %v309 = vsel %vm274, %v234, %v235
    %v310 = vsel %vm276, %v308, %v309
    %v311 = vsel %vm272, %v152, %v236
    %v312 = vsel %vm274, %v237, %v238
    %v313 = vsel %vm276, %v311, %v312
    %v314 = vsel %vm272, %v156, %v239
    %v315 = vsel %vm274, %v240, %v241
    %v316 = vsel %vm276, %v314, %v315
    %v317 = vsel %vm272, %v160, %v242
    %v318 = vsel %vm274, %v243, %v244
    %v319 = vsel %vm276, %v317, %v318
    %v320 = vsel %vm272, %v164, %v245
    %v321 = vsel %vm274, %v246, %v247
    %v322 = vsel %vm276, %v320, %v321
    %v323 = vsel %vm272, %v168, %v248
    %v324 = vsel %vm274, %v249, %v250
    %v325 = vsel %vm276, %v323, %v324
    %v326 = vsel %vm272, %v172, %v251
    %v327 = vsel %vm274, %v252, %v253
    %v328 = vsel %vm276, %v326, %v327
    %v329 = vsel %vm272, %v176, %v254
    %v330 = vsel %vm274, %v255, %v256
    %v331 = vsel %vm276, %v329, %v330
    %v332 = vsel %vm272, %v180, %v257
    %v333 = vsel %vm274, %v258, %v259
    %v334 = vsel %vm276, %v332, %v333
    %v335 = vsel %vm272, %v184, %v260
    %v336 = vsel %vm274, %v261, %v262
    %v337 = vsel %vm276, %v335, %v336
    %v338 = vsel %vm272, %v188, %v263
    %v339 = vsel %vm274, %v264, %v265
    %v340 = vsel %vm276, %v338, %v339
    %v341 = vsel %vm272, %v192, %v266
    %v342 = vsel %vm274, %v267, %v268
    %v343 = vsel %vm276, %v341, %v342
    %v344 = vsel %vm272, %v196, %v269
    %v345 = vsel %vm274, %v270, %v271
    %v346 = vsel %vm276, %v344, %v345
    %v371 = vmul.f32 %v68, %v277
    %v372 = vmul.f32 %v69, %v280
    %v373 = vmul.f32 %v70, %v283
    %v374 = vmul.f32 %v71, %v286
    %v375 = vmul.f32 %v72, %v289
    %v376 = vmul.f32 %v73, %v292
    %v377 = vmul.f32 %v74, %v295
    %v378 = vmul.f32 %v75, %v298
    %v379 = vmul.f32 %v76, %v301
    %v380 = vmul.f32 %v77, %v304
    %v381 = vmul.f32 %v78, %v307
    %v382 = vmul.f32 %v79, %v310
    %v383 = vmul.f32 %v80, %v313
    %v384 = vmul.f32 %v81, %v316
    %v385 = vmul.f32 %v82, %v319
    %v386 = vmul.f32 %v83, %v322
    %v387 = vmul.f32 %v84, %v325
    %v388 = vmul.f32 %v85, %v328
    %v389 = vmul.f32 %v86, %v331
    %v390 = vmul.f32 %v87, %v334
    %v391 = vmul.f32 %v88, %v337
    %v392 = vmul.f32 %v89, %v340
    %v393 = vmul.f32 %v90, %v343
    %v394 = vmul.f32 %v91, %v346
    %419 = vst [vmem:[#allocation1] ss:$4 sm:$0xff] %v371
    %s420 = scalar_lea.vmem [#allocation1], 32
    %421 = vst [vmem:[%s420] ss:$4 sm:$0xff] %v372
    %v422 = vld.sshfl [vmem:[#allocation1] sm:$0xff pattern:$0x73625140]
    %v423 = vld.sshfl [vmem:[#allocation1 + $0x8] sm:$0xff pattern:$0x73625140]
    %v424 = vld.sshfl [vmem:[#allocation1 + $0x10] sm:$0xff pattern:$0x73625140]
    %v425 = vld.sshfl [vmem:[#allocation1 + $0x18] sm:$0xff pattern:$0x73625140]
    %v426 = vld.sshfl [vmem:[#allocation1 + $0x20] sm:$0xff pattern:$0x73625140]
    %v427 = vld.sshfl [vmem:[#allocation1 + $0x28] sm:$0xff pattern:$0x73625140]
    %v428 = vld.sshfl [vmem:[#allocation1 + $0x30] sm:$0xff pattern:$0x73625140]
    %v429 = vld.sshfl [vmem:[#allocation1 + $0x38] sm:$0xff pattern:$0x73625140]
    %430 = vst [vmem:[#allocation1] ss:$4 sm:$0xff] %v373
    %431 = vst [vmem:[%s420] ss:$4 sm:$0xff] %v374
    %v432 = vld.sshfl [vmem:[#allocation1] sm:$0xff pattern:$0x73625140]
    %v433 = vld.sshfl [vmem:[#allocation1 + $0x8] sm:$0xff pattern:$0x73625140]
    %v434 = vld.sshfl [vmem:[#allocation1 + $0x10] sm:$0xff pattern:$0x73625140]
    %v435 = vld.sshfl [vmem:[#allocation1 + $0x18] sm:$0xff pattern:$0x73625140]
    %v436 = vld.sshfl [vmem:[#allocation1 + $0x20] sm:$0xff pattern:$0x73625140]
    %v437 = vld.sshfl [vmem:[#allocation1 + $0x28] sm:$0xff pattern:$0x73625140]
    %v438 = vld.sshfl [vmem:[#allocation1 + $0x30] sm:$0xff pattern:$0x73625140]
    %v439 = vld.sshfl [vmem:[#allocation1 + $0x38] sm:$0xff pattern:$0x73625140]
    %440 = vst [vmem:[#allocation1] ss:$4 sm:$0xff] %v375
    %441 = vst [vmem:[%s420] ss:$4 sm:$0xff] %v376
    %v442 = vld.sshfl [vmem:[#allocation1] sm:$0xff pattern:$0x73625140]
    %v443 = vld.sshfl [vmem:[#allocation1 + $0x8] sm:$0xff pattern:$0x73625140]
    %v444 = vld.sshfl [vmem:[#allocation1 + $0x10] sm:$0xff pattern:$0x73625140]
    %v445 = vld.sshfl [vmem:[#allocation1 + $0x18] sm:$0xff pattern:$0x73625140]
    %v446 = vld.sshfl [vmem:[#allocation1 + $0x20] sm:$0xff pattern:$0x73625140]
    %v447 = vld.sshfl [vmem:[#allocation1 + $0x28] sm:$0xff pattern:$0x73625140]
    %v448 = vld.sshfl [vmem:[#allocation1 + $0x30] sm:$0xff pattern:$0x73625140]
    %v449 = vld.sshfl [vmem:[#allocation1 + $0x38] sm:$0xff pattern:$0x73625140]
    %450 = vst [vmem:[#allocation1] ss:$4 sm:$0xff] %v377
    %451 = vst [vmem:[%s420] ss:$4 sm:$0xff] %v378
    %v452 = vld.sshfl [vmem:[#allocation1] sm:$0xff pattern:$0x73625140]
    %v453 = vld.sshfl [vmem:[#allocation1 + $0x8] sm:$0xff pattern:$0x73625140]
    %v454 = vld.sshfl [vmem:[#allocation1 + $0x10] sm:$0xff pattern:$0x73625140]
    %v455 = vld.sshfl [vmem:[#allocation1 + $0x18] sm:$0xff pattern:$0x73625140]
    %v456 = vld.sshfl [vmem:[#allocation1 + $0x20] sm:$0xff pattern:$0x73625140]
    %v457 = vld.sshfl [vmem:[#allocation1 + $0x28] sm:$0xff pattern:$0x73625140]
    %v458 = vld.sshfl [vmem:[#allocation1 + $0x30] sm:$0xff pattern:$0x73625140]
    %v459 = vld.sshfl [vmem:[#allocation1 + $0x38] sm:$0xff pattern:$0x73625140]
    %460 = vst [vmem:[#allocation1] ss:$4 sm:$0xff] %v379
    %461 = vst [vmem:[%s420] ss:$4 sm:$0xff] %v380
    %v462 = vld.sshfl [vmem:[#allocation1] sm:$0xff pattern:$0x73625140]
    %v463 = vld.sshfl [vmem:[#allocation1 + $0x8] sm:$0xff pattern:$0x73625140]
    %v464 = vld.sshfl [vmem:[#allocation1 + $0x10] sm:$0xff pattern:$0x73625140]
    %v465 = vld.sshfl [vmem:[#allocation1 + $0x18] sm:$0xff pattern:$0x73625140]
    %v466 = vld.sshfl [vmem:[#allocation1 + $0x20] sm:$0xff pattern:$0x73625140]
    %v467 = vld.sshfl [vmem:[#allocation1 + $0x28] sm:$0xff pattern:$0x73625140]
    %v468 = vld.sshfl [vmem:[#allocation1 + $0x30] sm:$0xff pattern:$0x73625140]
    %v469 = vld.sshfl [vmem:[#allocation1 + $0x38] sm:$0xff pattern:$0x73625140]
    %470 = vst [vmem:[#allocation1] ss:$4 sm:$0xff] %v381
    %471 = vst [vmem:[%s420] ss:$4 sm:$0xff] %v382
    %v472 = vld.sshfl [vmem:[#allocation1] sm:$0xff pattern:$0x73625140]
    %v473 = vld.sshfl [vmem:[#allocation1 + $0x8] sm:$0xff pattern:$0x73625140]
    %v474 = vld.sshfl [vmem:[#allocation1 + $0x10] sm:$0xff pattern:$0x73625140]
    %v475 = vld.sshfl [vmem:[#allocation1 + $0x18] sm:$0xff pattern:$0x73625140]
    %v476 = vld.sshfl [vmem:[#allocation1 + $0x20] sm:$0xff pattern:$0x73625140]
    %v477 = vld.sshfl [vmem:[#allocation1 + $0x28] sm:$0xff pattern:$0x73625140]
    %v478 = vld.sshfl [vmem:[#allocation1 + $0x30] sm:$0xff pattern:$0x73625140]
    %v479 = vld.sshfl [vmem:[#allocation1 + $0x38] sm:$0xff pattern:$0x73625140]
    %480 = vst [vmem:[#allocation1] ss:$4 sm:$0xff] %v383
    %481 = vst [vmem:[%s420] ss:$4 sm:$0xff] %v384
    %v482 = vld.sshfl [vmem:[#allocation1] sm:$0xff pattern:$0x73625140]
    %v483 = vld.sshfl [vmem:[#allocation1 + $0x8] sm:$0xff pattern:$0x73625140]
    %v484 = vld.sshfl [vmem:[#allocation1 + $0x10] sm:$0xff pattern:$0x73625140]
    %v485 = vld.sshfl [vmem:[#allocation1 + $0x18] sm:$0xff pattern:$0x73625140]
    %v486 = vld.sshfl [vmem:[#allocation1 + $0x20] sm:$0xff pattern:$0x73625140]
    %v487 = vld.sshfl [vmem:[#allocation1 + $0x28] sm:$0xff pattern:$0x73625140]
    %v488 = vld.sshfl [vmem:[#allocation1 + $0x30] sm:$0xff pattern:$0x73625140]
    %v489 = vld.sshfl [vmem:[#allocation1 + $0x38] sm:$0xff pattern:$0x73625140]
    %490 = vst [vmem:[#allocation1] ss:$4 sm:$0xff] %v385
    %491 = vst [vmem:[%s420] ss:$4 sm:$0xff] %v386
    %v492 = vld.sshfl [vmem:[#allocation1] sm:$0xff pattern:$0x73625140]
    %v493 = vld.sshfl [vmem:[#allocation1 + $0x8] sm:$0xff pattern:$0x73625140]
    %v494 = vld.sshfl [vmem:[#allocation1 + $0x10] sm:$0xff pattern:$0x73625140]
    %v495 = vld.sshfl [vmem:[#allocation1 + $0x18] sm:$0xff pattern:$0x73625140]
    %v496 = vld.sshfl [vmem:[#allocation1 + $0x20] sm:$0xff pattern:$0x73625140]
    %v497 = vld.sshfl [vmem:[#allocation1 + $0x28] sm:$0xff pattern:$0x73625140]
    %v498 = vld.sshfl [vmem:[#allocation1 + $0x30] sm:$0xff pattern:$0x73625140]
    %v499 = vld.sshfl [vmem:[#allocation1 + $0x38] sm:$0xff pattern:$0x73625140]
    %500 = vst [vmem:[#allocation1] ss:$4 sm:$0xff] %v387
    %501 = vst [vmem:[%s420] ss:$4 sm:$0xff] %v388
    %v502 = vld.sshfl [vmem:[#allocation1] sm:$0xff pattern:$0x73625140]
    %v503 = vld.sshfl [vmem:[#allocation1 + $0x8] sm:$0xff pattern:$0x73625140]
    %v504 = vld.sshfl [vmem:[#allocation1 + $0x10] sm:$0xff pattern:$0x73625140]
    %v505 = vld.sshfl [vmem:[#allocation1 + $0x18] sm:$0xff pattern:$0x73625140]
    %v506 = vld.sshfl [vmem:[#allocation1 + $0x20] sm:$0xff pattern:$0x73625140]
    %v507 = vld.sshfl [vmem:[#allocation1 + $0x28] sm:$0xff pattern:$0x73625140]
    %v508 = vld.sshfl [vmem:[#allocation1 + $0x30] sm:$0xff pattern:$0x73625140]
    %v509 = vld.sshfl [vmem:[#allocation1 + $0x38] sm:$0xff pattern:$0x73625140]
    %510 = vst [vmem:[#allocation1] ss:$4 sm:$0xff] %v389
    %511 = vst [vmem:[%s420] ss:$4 sm:$0xff] %v390
    %v512 = vld.sshfl [vmem:[#allocation1] sm:$0xff pattern:$0x73625140]
    %v513 = vld.sshfl [vmem:[#allocation1 + $0x8] sm:$0xff pattern:$0x73625140]
    %v514 = vld.sshfl [vmem:[#allocation1 + $0x10] sm:$0xff pattern:$0x73625140]
    %v515 = vld.sshfl [vmem:[#allocation1 + $0x18] sm:$0xff pattern:$0x73625140]
    %v516 = vld.sshfl [vmem:[#allocation1 + $0x20] sm:$0xff pattern:$0x73625140]
    %v517 = vld.sshfl [vmem:[#allocation1 + $0x28] sm:$0xff pattern:$0x73625140]
    %v518 = vld.sshfl [vmem:[#allocation1 + $0x30] sm:$0xff pattern:$0x73625140]
    %v519 = vld.sshfl [vmem:[#allocation1 + $0x38] sm:$0xff pattern:$0x73625140]
    %520 = vst [vmem:[#allocation1] ss:$4 sm:$0xff] %v391
    %521 = vst [vmem:[%s420] ss:$4 sm:$0xff] %v392
    %v522 = vld.sshfl [vmem:[#allocation1] sm:$0xff pattern:$0x73625140]
    %v523 = vld.sshfl [vmem:[#allocation1 + $0x8] sm:$0xff pattern:$0x73625140]
    %v524 = vld.sshfl [vmem:[#allocation1 + $0x10] sm:$0xff pattern:$0x73625140]
    %v525 = vld.sshfl [vmem:[#allocation1 + $0x18] sm:$0xff pattern:$0x73625140]
    %v526 = vld.sshfl [vmem:[#allocation1 + $0x20] sm:$0xff pattern:$0x73625140]
    %v527 = vld.sshfl [vmem:[#allocation1 + $0x28] sm:$0xff pattern:$0x73625140]
    %v528 = vld.sshfl [vmem:[#allocation1 + $0x30] sm:$0xff pattern:$0x73625140]
    %v529 = vld.sshfl [vmem:[#allocation1 + $0x38] sm:$0xff pattern:$0x73625140]
    %530 = vst [vmem:[#allocation1] ss:$4 sm:$0xff] %v393
    %531 = vst [vmem:[%s420] ss:$4 sm:$0xff] %v394
    %v532 = vld.sshfl [vmem:[#allocation1] sm:$0xff pattern:$0x73625140]
    %v533 = vld.sshfl [vmem:[#allocation1 + $0x8] sm:$0xff pattern:$0x73625140]
    %v534 = vld.sshfl [vmem:[#allocation1 + $0x10] sm:$0xff pattern:$0x73625140]
    %v535 = vld.sshfl [vmem:[#allocation1 + $0x18] sm:$0xff pattern:$0x73625140]
    %v536 = vld.sshfl [vmem:[#allocation1 + $0x20] sm:$0xff pattern:$0x73625140]
    %v537 = vld.sshfl [vmem:[#allocation1 + $0x28] sm:$0xff pattern:$0x73625140]
    %v538 = vld.sshfl [vmem:[#allocation1 + $0x30] sm:$0xff pattern:$0x73625140]
    %v539 = vld.sshfl [vmem:[#allocation1 + $0x38] sm:$0xff pattern:$0x73625140]
    %v636 = vsel %vm272, %v422, 0.0
    %v637 = vsel %vm272, %v423, 0.0
    %v638 = vadd.f32 %v636, %v637
    %v639 = vsel %vm272, %v424, 0.0
    %v640 = vadd.f32 %v638, %v639
    %v641 = vsel %vm272, %v425, 0.0
    %v642 = vadd.f32 %v640, %v641
    %v643 = vsel %vm272, %v426, 0.0
    %v644 = vadd.f32 %v642, %v643
    %v645 = vsel %vm272, %v427, 0.0
    %v646 = vadd.f32 %v644, %v645
    %v647 = vsel %vm272, %v428, 0.0
    %v648 = vadd.f32 %v646, %v647
    %v649 = vsel %vm272, %v429, 0.0
    %v650 = vadd.f32 %v648, %v649
    %v651 = vsel %vm272, %v432, 0.0
    %v652 = vadd.f32 %v650, %v651
    %v653 = vsel %vm272, %v433, 0.0
    %v654 = vadd.f32 %v652, %v653
    %v655 = vsel %vm272, %v434, 0.0
    %v656 = vadd.f32 %v654, %v655
    %v657 = vsel %vm272, %v435, 0.0
    %v658 = vadd.f32 %v656, %v657
    %v659 = vsel %vm272, %v436, 0.0
    %v660 = vadd.f32 %v658, %v659
    %v661 = vsel %vm272, %v437, 0.0
    %v662 = vadd.f32 %v660, %v661
    %v663 = vsel %vm272, %v438, 0.0
    %v664 = vadd.f32 %v662, %v663
    %v665 = vsel %vm272, %v439, 0.0
    %v666 = vadd.f32 %v664, %v665
    %v667 = vsel %vm272, %v442, 0.0
    %v668 = vadd.f32 %v666, %v667
    %v669 = vsel %vm272, %v443, 0.0
    %v670 = vadd.f32 %v668, %v669
    %v671 = vsel %vm272, %v444, 0.0
    %v672 = vadd.f32 %v670, %v671
    %v673 = vsel %vm272, %v445, 0.0
    %v674 = vadd.f32 %v672, %v673
    %v675 = vsel %vm272, %v446, 0.0
    %v676 = vadd.f32 %v674, %v675
    %v677 = vsel %vm272, %v447, 0.0
    %v678 = vadd.f32 %v676, %v677
    %v679 = vsel %vm272, %v448, 0.0
    %v680 = vadd.f32 %v678, %v679
    %v681 = vsel %vm272, %v449, 0.0
    %v682 = vadd.f32 %v680, %v681
    %v683 = vsel %vm272, %v452, 0.0
    %v684 = vadd.f32 %v682, %v683
    %v685 = vsel %vm272, %v453, 0.0
    %v686 = vadd.f32 %v684, %v685
    %v687 = vsel %vm272, %v454, 0.0
    %v688 = vadd.f32 %v686, %v687
    %v689 = vsel %vm272, %v455, 0.0
    %v690 = vadd.f32 %v688, %v689
    %v691 = vsel %vm272, %v456, 0.0
    %v692 = vadd.f32 %v690, %v691
    %v693 = vsel %vm272, %v457, 0.0
    %v694 = vadd.f32 %v692, %v693
    %v695 = vsel %vm272, %v458, 0.0
    %v696 = vadd.f32 %v694, %v695
    %v697 = vsel %vm272, %v459, 0.0
    %v698 = vadd.f32 %v696, %v697
    %v699 = vsel %vm272, %v462, 0.0
    %v700 = vadd.f32 %v698, %v699
    %v701 = vsel %vm272, %v463, 0.0
    %v702 = vadd.f32 %v700, %v701
    %v703 = vsel %vm272, %v464, 0.0
    %v704 = vadd.f32 %v702, %v703
    %v705 = vsel %vm272, %v465, 0.0
    %v706 = vadd.f32 %v704, %v705
    %v707 = vsel %vm272, %v466, 0.0
    %v708 = vadd.f32 %v706, %v707
    %v709 = vsel %vm272, %v467, 0.0
    %v710 = vadd.f32 %v708, %v709
    %v711 = vsel %vm272, %v468, 0.0
    %v712 = vadd.f32 %v710, %v711
    %v713 = vsel %vm272, %v469, 0.0
    %v714 = vadd.f32 %v712, %v713
    %v715 = vsel %vm272, %v472, 0.0
    %v716 = vadd.f32 %v714, %v715
    %v717 = vsel %vm272, %v473, 0.0
    %v718 = vadd.f32 %v716, %v717
    %v719 = vsel %vm272, %v474, 0.0
    %v720 = vadd.f32 %v718, %v719
    %v721 = vsel %vm272, %v475, 0.0
    %v722 = vadd.f32 %v720, %v721
    %v723 = vsel %vm272, %v476, 0.0
    %v724 = vadd.f32 %v722, %v723
    %v725 = vsel %vm272, %v477, 0.0
    %v726 = vadd.f32 %v724, %v725
    %v727 = vsel %vm272, %v478, 0.0
    %v728 = vadd.f32 %v726, %v727
    %v729 = vsel %vm272, %v479, 0.0
    %v730 = vadd.f32 %v728, %v729
    %v731 = vsel %vm272, %v482, 0.0
    %v732 = vadd.f32 %v730, %v731
    %v733 = vsel %vm272, %v483, 0.0
    %v734 = vadd.f32 %v732, %v733
    %v735 = vsel %vm272, %v484, 0.0
    %v736 = vadd.f32 %v734, %v735
    %v737 = vsel %vm272, %v485, 0.0
    %v738 = vadd.f32 %v736, %v737
    %v739 = vsel %vm272, %v486, 0.0
    %v740 = vadd.f32 %v738, %v739
    %v741 = vsel %vm272, %v487, 0.0
    %v742 = vadd.f32 %v740, %v741
    %v743 = vsel %vm272, %v488, 0.0
    %v744 = vadd.f32 %v742, %v743
    %v745 = vsel %vm272, %v489, 0.0
    %v746 = vadd.f32 %v744, %v745
    %v747 = vsel %vm272, %v492, 0.0
    %v748 = vadd.f32 %v746, %v747
    %v749 = vsel %vm272, %v493, 0.0
    %v750 = vadd.f32 %v748, %v749
    %v751 = vsel %vm272, %v494, 0.0
    %v752 = vadd.f32 %v750, %v751
    %v753 = vsel %vm272, %v495, 0.0
    %v754 = vadd.f32 %v752, %v753
    %v755 = vsel %vm272, %v496, 0.0
    %v756 = vadd.f32 %v754, %v755
    %v757 = vsel %vm272, %v497, 0.0
    %v758 = vadd.f32 %v756, %v757
    %v759 = vsel %vm272, %v498, 0.0
    %v760 = vadd.f32 %v758, %v759
    %v761 = vsel %vm272, %v499, 0.0
    %v762 = vadd.f32 %v760, %v761
    %v763 = vsel %vm272, %v502, 0.0
    %v764 = vadd.f32 %v762, %v763
    %v765 = vsel %vm272, %v503, 0.0
    %v766 = vadd.f32 %v764, %v765
    %v767 = vsel %vm272, %v504, 0.0
    %v768 = vadd.f32 %v766, %v767
    %v769 = vsel %vm272, %v505, 0.0
    %v770 = vadd.f32 %v768, %v769
    %v771 = vsel %vm272, %v506, 0.0
    %v772 = vadd.f32 %v770, %v771
    %v773 = vsel %vm272, %v507, 0.0
    %v774 = vadd.f32 %v772, %v773
    %v775 = vsel %vm272, %v508, 0.0
    %v776 = vadd.f32 %v774, %v775
    %v777 = vsel %vm272, %v509, 0.0
    %v778 = vadd.f32 %v776, %v777
    %v779 = vsel %vm272, %v512, 0.0
    %v780 = vadd.f32 %v778, %v779
    %v781 = vsel %vm272, %v513, 0.0
    %v782 = vadd.f32 %v780, %v781
    %v783 = vsel %vm272, %v514, 0.0
    %v784 = vadd.f32 %v782, %v783
    %v785 = vsel %vm272, %v515, 0.0
    %v786 = vadd.f32 %v784, %v785
    %v787 = vsel %vm272, %v516, 0.0
    %v788 = vadd.f32 %v786, %v787
    %v789 = vsel %vm272, %v517, 0.0
    %v790 = vadd.f32 %v788, %v789
    %v791 = vsel %vm272, %v518, 0.0
    %v792 = vadd.f32 %v790, %v791
    %v793 = vsel %vm272, %v519, 0.0
    %v794 = vadd.f32 %v792, %v793
    %v795 = vsel %vm272, %v522, 0.0
    %v796 = vadd.f32 %v794, %v795
    %v797 = vsel %vm272, %v523, 0.0
    %v798 = vadd.f32 %v796, %v797
    %v799 = vsel %vm272, %v524, 0.0
    %v800 = vadd.f32 %v798, %v799
    %v801 = vsel %vm272, %v525, 0.0
    %v802 = vadd.f32 %v800, %v801
    %v803 = vsel %vm272, %v526, 0.0
    %v804 = vadd.f32 %v802, %v803
    %v805 = vsel %vm272, %v527, 0.0
    %v806 = vadd.f32 %v804, %v805
    %v807 = vsel %vm272, %v528, 0.0
    %v808 = vadd.f32 %v806, %v807
    %v809 = vsel %vm272, %v529, 0.0
    %v810 = vadd.f32 %v808, %v809
    %v811 = vsel %vm272, %v532, 0.0
    %v812 = vadd.f32 %v810, %v811
    %v813 = vsel %vm272, %v533, 0.0
    %v814 = vadd.f32 %v812, %v813
    %v815 = vsel %vm272, %v534, 0.0
    %v816 = vadd.f32 %v814, %v815
    %v817 = vsel %vm272, %v535, 0.0
    %v818 = vadd.f32 %v816, %v817
    %v819 = vsel %vm272, %v536, 0.0
    %v820 = vadd.f32 %v818, %v819
    %v821 = vsel %vm272, %v537, 0.0
    %v822 = vadd.f32 %v820, %v821
    %v823 = vsel %vm272, %v538, 0.0
    %v824 = vadd.f32 %v822, %v823
    %v825 = vsel %vm272, %v539, 0.0
    %v826 = vadd.f32 %v824, %v825
    %827 = vadd.xlane.f32.xlu0 %v826
    %v828 = vpop.xlane.xlu0 %827
    %s829 = sld [smem:[#allocation2]]
    %v830 = vstv %s829
    %v831 = vadd.f32 %v828, %v830
    %vm832 = vcmask 1024
    %833 = vst.msk [vmem:[#allocation8] sm:$0x3] %vm832, %v831
    %v834 = vxor.u32 %v831, 2147483648
    %v835 = vmul.f32 %v834, 1.442695
    %v836 = vpow.pop %v835
    %v837 = vadd.f32 %v836, 1.0
    %v838 = vrcp.pop %v837
    %v839 = vmul.f32 %v837, %v838
    %v840 = vsub.f32 1.0, %v839
    %v841 = vmul.f32 %v838, %v840
    %v842 = vadd.f32 %v838, %v841
    %vm843 = vweird.f32 %v837
    %vm844 = vweird.f32 %v838
    %vm845 = vmor %vm843, %vm844
    %v846 = vsel %vm845, %v838, %v842
    %v847 = vand.u32 2147483647, %v837
    %vm848 = vcmp.eq.f32.partialorder %v847, 8.507059e+37
    %v849 = vand.u32 %v837, 2147483648
    %v850 = vor.u32 1.1754944e-38, %v849
    %v851 = vsel %vm848, %v850, %v846
    %v852 = vmul.f32 1.0, %v851
    %vm853 = vcmask 9224
    %854 = vst.msk [vmem:[#allocation8] sm:$0x3] %vm853, %v852
    // Predicated region
    $region22: #{tpu_custom_call.1} parent=1 // pred_check
      _
    $region23: #{tpu_custom_call.1} parent=1 // pred_check_branch
      %856 = sbr.rel (0) target = $region25
    $region24: #{tpu_custom_call.1} parent=1 // pred_region
      %858 = vsyncadd [#allocation5], 0
      %s860 = sshll.u32 [#allocation8], 4
      %s861 = int_to_ptr.vmem [resolvable:$true] %s860
      %s862 = sshll.u32 %s3, 4
      %s863 = int_to_ptr.hbm [resolvable:$true] %s862
      %865 = dma.vmem_to_hbm [thread:$0]  %s861, 32, %s863, [#allocation5]
    $region25: #{tpu_custom_call.1} parent=1 // pred_fallthru
      _
    // Predicated region
    $region26: #{tpu_custom_call.1} parent=1 // pred_check
      _
    $region27: #{tpu_custom_call.1} parent=1 // pred_check_branch
      %867 = sbr.rel (0) target = $region29
    $region28: #{tpu_custom_call.1} parent=1 // pred_region
      %869 = dma.done [#allocation5], 32
    $region29: #{tpu_custom_call.1} parent=1 // pred_fallthru
      _
    %870 = vsyncpa [#allocation4], 1
    %871 = vsyncpa [#allocation7], 1
    %872 = vsyncpa [#allocation5], 1

</llo_original>
